<compile_context>
chip_gen: v7x
topology: tpu7x:2x2x1
jax: 0.10.0
libtpu: 0.0.40
codegen_flags: <defaults>
</compile_context>

<pallas_src>
import jax
import jax.numpy as jnp
from jax.experimental import pallas as pl
from jax.experimental.pallas import tpu as pltpu

H_IN = 16        # input features
H_RAW = 120      # PyTorch hidden width
H_PAD = 128      # lane-aligned hidden width
H_OUT = 4        # output features
H_OUT_PAD = 8    # sublane-aligned output width (rows 4..7 are zero weights)
LANE = 128


def dronefp_kernel(x_ref, w1_ref, w2_ref, w3_ref, w4_ref, b_ref, o_ref):
    """Fused Normalize(+folded) -> 3x[Linear+ReLU] -> Linear(+folded sigmoid affine) -> clip.

    All activations are kept transposed: features on sublanes, batch on the
    (lane-dense) minor axis, so loads/stores are full-width.
    """
    x = x_ref[...]                                                    # (16, tb) bf16
    b = b_ref[...]                                                    # (128, 4) f32

    # Linear(16 -> 128) + bias + ReLU   (Normalize folded into w1/bias col 0)
    h = jnp.dot(w1_ref[...], x, preferred_element_type=jnp.float32)  # (128, tb)
    h = jnp.maximum(h + b[:, 0:1], 0.0).astype(jnp.bfloat16)

    # Linear(128 -> 128) + bias + ReLU
    h = jnp.dot(w2_ref[...], h, preferred_element_type=jnp.float32)
    h = jnp.maximum(h + b[:, 1:2], 0.0).astype(jnp.bfloat16)

    # Linear(128 -> 128) + bias + ReLU
    h = jnp.dot(w3_ref[...], h, preferred_element_type=jnp.float32)
    h = jnp.maximum(h + b[:, 2:3], 0.0).astype(jnp.bfloat16)

    # Linear(128 -> 8pad) ; CustomSigmoid2 == clip(0.5 + z/32, 0, 1) exactly,
    # with the 1/32 scale and +0.5 already folded into w4 / bias col 3.
    z = jnp.dot(w4_ref[...], h, preferred_element_type=jnp.float32)  # (8, tb)
    o_ref[...] = jnp.clip(z + b[0:H_OUT_PAD, 3:4], 0.0, 1.0)


def _round_up(x, m):
    return ((x + m - 1) // m) * m


def _choose_tb(B, tile_b):
    """Batch tile: multiple of 128 (lane axis); >=2 grid steps when B > 128 (v7x megacore)."""
    tb = max(LANE, _round_up(min(tile_b, B), LANE))
    if B > LANE and _round_up(B, tb) // tb < 2:
        tb = _round_up(pl.cdiv(B, 2), LANE)
    return tb


def prepare_params(params, mean, std):
    """Fold Normalize into layer 1, fold sigmoid affine into layer 4, pad 120->128,
    transpose to (out, in) layout, cast matmul operands to bf16."""
    mean_v = jnp.broadcast_to(jnp.asarray(mean, jnp.float32).reshape(-1), (H_IN,))
    std_v = jnp.broadcast_to(jnp.asarray(std, jnp.float32).reshape(-1), (H_IN,))
    inv_std = 1.0 / std_v

    # (x - mean)/std @ W1 + b1  ==  x @ (diag(1/std) W1) + (b1 - (mean/std) @ W1)
    w1 = params["w1"] * inv_std[:, None]                         # (16, 120)
    b1 = params["b1"] - (mean_v * inv_std) @ params["w1"]        # (1, 120)

    # CustomSigmoid2 affine fold: clip(0.5 + (h@W4 + b4)/32) == clip(h@(W4/32) + (0.5 + b4/32))
    w4 = params["w4"] * (1.0 / 32.0)                             # (120, 4)
    b4 = 0.5 + params["b4"] * (1.0 / 32.0)                       # (1, 4)

    ph = H_PAD - H_RAW
    w1t = jnp.pad(w1, ((0, 0), (0, ph))).T                       # (128, 16)
    w2t = jnp.pad(params["w2"], ((0, ph), (0, ph))).T            # (128, 128)
    w3t = jnp.pad(params["w3"], ((0, ph), (0, ph))).T            # (128, 128)
    w4t = jnp.pad(w4, ((0, ph), (0, H_OUT_PAD - H_OUT))).T       # (8, 128)

    # All four biases packed into a single (128, 4) f32 block; column j = layer j+1.
    b_all = jnp.concatenate(
        [
            jnp.pad(b1, ((0, 0), (0, ph))),
            jnp.pad(params["b2"], ((0, 0), (0, ph))),
            jnp.pad(params["b3"], ((0, 0), (0, ph))),
            jnp.pad(b4, ((0, 0), (0, H_PAD - H_OUT))),
        ],
        axis=0,
    ).T                                                           # (128, 4)

    return {
        "w1t": w1t.astype(jnp.bfloat16),
        "w2t": w2t.astype(jnp.bfloat16),
        "w3t": w3t.astype(jnp.bfloat16),
        "w4t": w4t.astype(jnp.bfloat16),
        "b_all": b_all.astype(jnp.float32),
    }


def dronefp_forward(x, params, mean=0.0, std=1.0, tile_b=8192):
    """x: (B, 16) float32. params: dict with (in, out)-layout weights (see init_params)."""
    B, F = x.shape
    assert F == H_IN

    p = prepare_params(params, mean, std)

    tb = _choose_tb(B, tile_b)
    Bp = _round_up(B, tb)

    # Host-side layout plumbing: pad batch, cast to bf16, transpose so features
    # sit on sublanes and batch on the lane-dense minor axis.
    xt = jnp.pad(x, ((0, Bp - B), (0, 0))).astype(jnp.bfloat16).T   # (16, Bp) bf16

    grid = (Bp // tb,)

    flops = 2 * Bp * (H_IN * H_PAD + 2 * H_PAD * H_PAD + H_PAD * H_OUT_PAD)
    bytes_accessed = (
        Bp * H_IN * 2 + Bp * H_OUT_PAD * 4                               # x read + out write
        + (H_IN * H_PAD + 2 * H_PAD * H_PAD + H_OUT_PAD * H_PAD) * 2     # bf16 weights
        + H_PAD * 4 * 4                                                  # f32 biases
    )

    out_t = pl.pallas_call(
        dronefp_kernel,
        out_shape=jax.ShapeDtypeStruct((H_OUT_PAD, Bp), jnp.float32),
        grid=grid,
        in_specs=[
            pl.BlockSpec((H_IN, tb), lambda i: (0, i)),          # x tile (pipelined, lane-dense)
            pl.BlockSpec((H_PAD, H_IN), lambda i: (0, 0)),       # w1^T (resident)
            pl.BlockSpec((H_PAD, H_PAD), lambda i: (0, 0)),      # w2^T (resident)
            pl.BlockSpec((H_PAD, H_PAD), lambda i: (0, 0)),      # w3^T (resident)
            pl.BlockSpec((H_OUT_PAD, H_PAD), lambda i: (0, 0)),  # w4^T (resident)
            pl.BlockSpec((H_PAD, 4), lambda i: (0, 0)),          # all biases (resident)
        ],
        out_specs=pl.BlockSpec((H_OUT_PAD, tb), lambda i: (0, i)),
        compiler_params=pltpu.CompilerParams(
            dimension_semantics=("parallel",),
            vmem_limit_bytes=32 * 1024 * 1024,
        ),
        cost_estimate=pl.CostEstimate(
            flops=flops, transcendentals=0, bytes_accessed=bytes_accessed),
    )(xt, p["w1t"], p["w2t"], p["w3t"], p["w4t"], p["b_all"])

    # (8, Bp) -> (B, 4): drop padded output rows / batch columns, un-transpose.
    return out_t[:H_OUT, :B].T


def init_params(key):
    """Deterministic synthetic parameters matching the PyTorch module shapes.

    PyTorch Linear weights are (out, in); stored here transposed as (in, out).
    Biases stored as (1, out).
    """
    ks = jax.random.split(key, 8)

    def w(k, shape, fan_in):
        return jax.random.normal(k, shape, jnp.float32) * (1.0 / jnp.sqrt(fan_in))

    def b(k, out):
        return jax.random.normal(k, (1, out), jnp.float32) * 0.01

    return {
        "w1": w(ks[0], (H_IN, H_RAW), H_IN),    "b1": b(ks[1], H_RAW),
        "w2": w(ks[2], (H_RAW, H_RAW), H_RAW),  "b2": b(ks[3], H_RAW),
        "w3": w(ks[4], (H_RAW, H_RAW), H_RAW),  "b3": b(ks[5], H_RAW),
        "w4": w(ks[6], (H_RAW, H_OUT), H_RAW),  "b4": b(ks[7], H_OUT),
    }


def dronefp_reference(x, params, mean=0.0, std=1.0):
    """Pure-JAX f32 reference on the original (unpadded, unfolded) parameters."""
    h = (x - mean) / std
    h = jnp.maximum(h @ params["w1"] + params["b1"], 0.0)
    h = jnp.maximum(h @ params["w2"] + params["b2"], 0.0)
    h = jnp.maximum(h @ params["w3"] + params["b3"], 0.0)
    z = h @ params["w4"] + params["b4"]
    y = 0.5 + (1.0 / 32.0) * jnp.abs(z)
    y = jnp.where(z >= 0.0, y, 1.0 - y)
    return jnp.clip(y, 0.0, 1.0)


if __name__ == "__main__":
    key = jax.random.PRNGKey(0)
    k_x, k_p, k_m, k_s = jax.random.split(key, 4)

    B = 300                      # not a multiple of 128 -> exercises batch padding/slicing
    x = jax.random.normal(k_x, (B, H_IN), jnp.float32)
    params = init_params(k_p)
    # Per-feature normalization stats (module defaults X_mean=0, X_std=0 would
    # divide by zero, so nonzero per-feature stats are used here).
    mean = jax.random.normal(k_m, (H_IN,), jnp.float32) * 0.5
    std = 1.0 + jax.random.uniform(k_s, (H_IN,), jnp.float32)

    # tile_b=128 forces a multi-step batch grid (grid=(3,)) to exercise pipelining;
    # production default is tile_b=8192.
    out = dronefp_forward(x, params, mean=mean, std=std, tile_b=128)
    out = jax.block_until_ready(out)

    ref = dronefp_reference(x, params, mean=mean, std=std)
    assert out.shape == (B, H_OUT)
    # bf16 matmul operands -> relaxed tolerance vs the f32 reference
    # (the 1/32 output slope keeps the absolute error tiny).
    assert jnp.allclose(out, ref, atol=1e-2, rtol=1e-2), "mismatch vs reference"

    print("KERNEL_OK")
</pallas_src>

<mosaic_0001>
module attributes {stable_mosaic.version = 11 : i64} {
  func.func @dronefp_kernel(%arg0: i32, %arg1: memref<16x128xbf16, #tpu.memory_space<vmem>>, %arg2: memref<128x16xbf16, #tpu.memory_space<vmem>>, %arg3: memref<128x128xbf16, #tpu.memory_space<vmem>>, %arg4: memref<128x128xbf16, #tpu.memory_space<vmem>>, %arg5: memref<8x128xbf16, #tpu.memory_space<vmem>>, %arg6: memref<128x4xf32, #tpu.memory_space<vmem>>, %arg7: memref<8x128xf32, #tpu.memory_space<vmem>>) attributes {dimension_semantics = [#tpu.dimension_semantics<parallel>], iteration_bounds = array<i64: 3>, scalar_prefetch = 0 : i64, scratch_operands = 0 : i64, tpu.core_type = #tpu.core_type<tc>, window_params = [{transform_indices = @transform_0, window_bounds = array<i64: 16, 128>}, {pipeline_mode = #tpu.pipeline_mode<synchronous>, transform_indices = @transform_1, window_bounds = array<i64: 128, 16>}, {pipeline_mode = #tpu.pipeline_mode<synchronous>, transform_indices = @transform_2, window_bounds = array<i64: 128, 128>}, {pipeline_mode = #tpu.pipeline_mode<synchronous>, transform_indices = @transform_3, window_bounds = array<i64: 128, 128>}, {pipeline_mode = #tpu.pipeline_mode<synchronous>, transform_indices = @transform_4, window_bounds = array<i64: 8, 128>}, {pipeline_mode = #tpu.pipeline_mode<synchronous>, transform_indices = @transform_5, window_bounds = array<i64: 128, 4>}, {transform_indices = @transform_6, window_bounds = array<i64: 8, 128>}]} {
    %c0 = arith.constant 0 : index
    %c0_0 = arith.constant 0 : index
    %0 = vector.load %arg1[%c0, %c0_0] : memref<16x128xbf16, #tpu.memory_space<vmem>>, vector<16x128xbf16>
    %c0_1 = arith.constant 0 : index
    %c0_2 = arith.constant 0 : index
    %1 = vector.load %arg6[%c0_1, %c0_2] : memref<128x4xf32, #tpu.memory_space<vmem>>, vector<128x4xf32>
    %c0_3 = arith.constant 0 : index
    %c0_4 = arith.constant 0 : index
    %2 = vector.load %arg2[%c0_3, %c0_4] : memref<128x16xbf16, #tpu.memory_space<vmem>>, vector<128x16xbf16>
    %cst = arith.constant dense<0.000000e+00> : vector<128x128xf32>
    %3 = tpu.matmul %2, %0, %cst {dimension_numbers = #tpu.dot_dimension_numbers<[1], [0], [0], [1], [0, 0, 1, 1], [], []>} : vector<128x16xbf16>, vector<16x128xbf16>, vector<128x128xf32> -> vector<128x128xf32>
    %4 = vector.extract_strided_slice %1 {offsets = [0, 0], sizes = [128, 1], strides = [1, 1]} : vector<128x4xf32> to vector<128x1xf32>
    %5 = vector.broadcast %4 : vector<128x1xf32> to vector<128x128xf32>
    %6 = arith.addf %3, %5 : vector<128x128xf32>
    %cst_5 = arith.constant 0.000000e+00 : f32
    %7 = vector.broadcast %cst_5 : f32 to vector<128x128xf32>
    %8 = arith.maximumf %6, %7 : vector<128x128xf32>
    %9 = arith.truncf %8 : vector<128x128xf32> to vector<128x128xbf16>
    %c0_6 = arith.constant 0 : index
    %c0_7 = arith.constant 0 : index
    %10 = vector.load %arg3[%c0_6, %c0_7] : memref<128x128xbf16, #tpu.memory_space<vmem>>, vector<128x128xbf16>
    %cst_8 = arith.constant dense<0.000000e+00> : vector<128x128xf32>
    %11 = tpu.matmul %10, %9, %cst_8 {dimension_numbers = #tpu.dot_dimension_numbers<[1], [0], [0], [1], [0, 0, 1, 1], [], []>} : vector<128x128xbf16>, vector<128x128xbf16>, vector<128x128xf32> -> vector<128x128xf32>
    %12 = vector.extract_strided_slice %1 {offsets = [0, 1], sizes = [128, 1], strides = [1, 1]} : vector<128x4xf32> to vector<128x1xf32>
    %13 = vector.broadcast %12 : vector<128x1xf32> to vector<128x128xf32>
    %14 = arith.addf %11, %13 : vector<128x128xf32>
    %cst_9 = arith.constant 0.000000e+00 : f32
    %15 = vector.broadcast %cst_9 : f32 to vector<128x128xf32>
    %16 = arith.maximumf %14, %15 : vector<128x128xf32>
    %17 = arith.truncf %16 : vector<128x128xf32> to vector<128x128xbf16>
    %c0_10 = arith.constant 0 : index
    %c0_11 = arith.constant 0 : index
    %18 = vector.load %arg4[%c0_10, %c0_11] : memref<128x128xbf16, #tpu.memory_space<vmem>>, vector<128x128xbf16>
    %cst_12 = arith.constant dense<0.000000e+00> : vector<128x128xf32>
    %19 = tpu.matmul %18, %17, %cst_12 {dimension_numbers = #tpu.dot_dimension_numbers<[1], [0], [0], [1], [0, 0, 1, 1], [], []>} : vector<128x128xbf16>, vector<128x128xbf16>, vector<128x128xf32> -> vector<128x128xf32>
    %20 = vector.extract_strided_slice %1 {offsets = [0, 2], sizes = [128, 1], strides = [1, 1]} : vector<128x4xf32> to vector<128x1xf32>
    %21 = vector.broadcast %20 : vector<128x1xf32> to vector<128x128xf32>
    %22 = arith.addf %19, %21 : vector<128x128xf32>
    %cst_13 = arith.constant 0.000000e+00 : f32
    %23 = vector.broadcast %cst_13 : f32 to vector<128x128xf32>
    %24 = arith.maximumf %22, %23 : vector<128x128xf32>
    %25 = arith.truncf %24 : vector<128x128xf32> to vector<128x128xbf16>
    %c0_14 = arith.constant 0 : index
    %c0_15 = arith.constant 0 : index
    %26 = vector.load %arg5[%c0_14, %c0_15] : memref<8x128xbf16, #tpu.memory_space<vmem>>, vector<8x128xbf16>
    %cst_16 = arith.constant dense<0.000000e+00> : vector<8x128xf32>
    %27 = tpu.matmul %26, %25, %cst_16 {dimension_numbers = #tpu.dot_dimension_numbers<[1], [0], [0], [1], [0, 0, 1, 1], [], []>} : vector<8x128xbf16>, vector<128x128xbf16>, vector<8x128xf32> -> vector<8x128xf32>
    %28 = vector.extract_strided_slice %1 {offsets = [0, 3], sizes = [8, 1], strides = [1, 1]} : vector<128x4xf32> to vector<8x1xf32>
    %29 = vector.broadcast %28 : vector<8x1xf32> to vector<8x128xf32>
    %30 = arith.addf %27, %29 : vector<8x128xf32>
    %cst_17 = arith.constant 0.000000e+00 : f32
    %cst_18 = arith.constant 1.000000e+00 : f32
    %31 = vector.broadcast %cst_17 : f32 to vector<8x128xf32>
    %32 = arith.maximumf %31, %30 : vector<8x128xf32>
    %33 = vector.broadcast %cst_18 : f32 to vector<8x128xf32>
    %34 = arith.minimumf %33, %32 : vector<8x128xf32>
    %c0_19 = arith.constant 0 : index
    %c0_20 = arith.constant 0 : index
    %35 = vector.load %arg7[%c0_19, %c0_20] : memref<8x128xf32, #tpu.memory_space<vmem>>, vector<8x128xf32>
    tpu.vector_store %arg7[%c0_19, %c0_20], %34 {strides = array<i32>} : memref<8x128xf32, #tpu.memory_space<vmem>>, vector<8x128xf32>,
    return
  }
  func.func @transform_0(%arg0: i32) -> (i32, i32) {
    %c0_i32 = arith.constant 0 : i32
    %c0_i32_0 = arith.constant 0 : i32
    return %c0_i32, %arg0 : i32, i32
  }
  func.func @transform_1(%arg0: i32) -> (i32, i32) {
    %c0_i32 = arith.constant 0 : i32
    %c0_i32_0 = arith.constant 0 : i32
    %c0_i32_1 = arith.constant 0 : i32
    return %c0_i32, %c0_i32_0 : i32, i32
  }
  func.func @transform_2(%arg0: i32) -> (i32, i32) {
    %c0_i32 = arith.constant 0 : i32
    %c0_i32_0 = arith.constant 0 : i32
    %c0_i32_1 = arith.constant 0 : i32
    return %c0_i32, %c0_i32_0 : i32, i32
  }
  func.func @transform_3(%arg0: i32) -> (i32, i32) {
    %c0_i32 = arith.constant 0 : i32
    %c0_i32_0 = arith.constant 0 : i32
    %c0_i32_1 = arith.constant 0 : i32
    return %c0_i32, %c0_i32_0 : i32, i32
  }
  func.func @transform_4(%arg0: i32) -> (i32, i32) {
    %c0_i32 = arith.constant 0 : i32
    %c0_i32_0 = arith.constant 0 : i32
    %c0_i32_1 = arith.constant 0 : i32
    return %c0_i32, %c0_i32_0 : i32, i32
  }
  func.func @transform_5(%arg0: i32) -> (i32, i32) {
    %c0_i32 = arith.constant 0 : i32
    %c0_i32_0 = arith.constant 0 : i32
    %c0_i32_1 = arith.constant 0 : i32
    return %c0_i32, %c0_i32_0 : i32, i32
  }
  func.func @transform_6(%arg0: i32) -> (i32, i32) {
    %c0_i32 = arith.constant 0 : i32
    %c0_i32_0 = arith.constant 0 : i32
    return %c0_i32, %arg0 : i32, i32
  }
}

</mosaic_0001>

<llo_original>
// kernel: tpu_custom_call.1
$region0: #{tpu_custom_call.1}
  #allocation0 [shape = 'u32[]', space=smem, size = 0x4, offset = 0x4, fixed_abs, tag = 'smem constant byte address 0x4 - core index']
  #allocation1 [shape = 'u32[144,128]{1,0:T(1,128)}', space=vmem, size = 0x12000, scoped, tag = 'internal scratch']
  %s0 = inlined_call_operand.vmem [shape: bf16[16,384], index: 0, kind: input, shape index: {}]
  %s1 = inlined_call_operand.vmem [shape: bf16[128,16], index: 1, kind: input, shape index: {}]
  %s2 = inlined_call_operand.vmem [shape: bf16[128,128], index: 2, kind: input, shape index: {}]
  %s3 = inlined_call_operand.vmem [shape: bf16[128,128], index: 3, kind: input, shape index: {}]
  %s4 = inlined_call_operand.vmem [shape: bf16[8,128], index: 4, kind: input, shape index: {}]
  %s5 = inlined_call_operand.vmem [shape: f32[128,4], index: 5, kind: input, shape index: {}]
  %s6 = inlined_call_operand.hbm [shape: f32[8,384], index: 6, kind: output, shape index: {}]
  %s7 = sld [smem:[#allocation0]]
  $region98: #{tpu_custom_call.1} parent=0
    _
  %s9 = ssub.s32 1, %s7
  %s10 = scalar_select 0, %s9, %s7
  $region1: #{tpu_custom_call.1} parent=0
    #allocation2 [shape = 'u8[8192]{0}', space=vmem, size = 0x2000, scoped, tag = 'input window, operand 0']
    #allocation3 [shape = 'u8[8192]{0}', space=vmem, size = 0x2000, scoped, tag = 'output window, operand 0']
    #allocation4 [shape = 's32[2]{0}', space=sflag, size = 0x8, scoped, tag = 'scoped memory for tpu_custom_call.1']
    %11 = vsyncpa [#allocation4], 0
    %s12 = scalar_lea.sflag [#allocation4], 1
    %13 = vsyncpa %s12, 0
    loop: start=0, step=1, limit=5
    $region2: #{tpu_custom_call.1} parent=1 // loop_pre_header
      _
    $region3: #{tpu_custom_call.1} parent=1 // loop_header
      %s15 = sphi 0, %s19
      %p16 = scmp.ge.s32.totalorder %s15, 5
      %s25 = sphi 0, %s27
      %s28 = sphi 0, %s25
      %s29 = sphi 0, %s28
      %s45 = sphi 0, %s29
      %s49 = sphi 0, %s49
      %s51 = sphi 0, %s49
      %s52 = sphi 0, %s51
      %s66 = sphi 0, %s52
      %s70 = sphi 0, %s70
      %s72 = sphi 0, %s70
      %s73 = sphi 0, %s72
      %s87 = sphi 0, %s73
      %s91 = sphi 0, %s91
      %s93 = sphi 0, %s91
      %s94 = sphi 0, %s93
      %s108 = sphi 0, %s94
      %s112 = sphi 0, %s112
      %s114 = sphi 0, %s112
      %s115 = sphi 0, %s114
      %s129 = sphi 0, %s115
      %s133 = sphi 0, %s133
      %s135 = sphi 0, %s133
      %s136 = sphi 0, %s135
      %s150 = sphi 0, %s136
      %s156 = sphi 0, %s158
      %s159 = sphi 0, %s156
      %s160 = sphi 0, %s159
      %s176 = sphi 0, %s160
    $region4: #{tpu_custom_call.1} parent=1 // loop_header_branch
      %18 = sbr.rel (%p16) target = $region8
    $region5: #{tpu_custom_call.1} parent=1 // loop_body
      %s20 = ssub.s32 %s15, 1
      %s21 = ssub.s32 %s15, 2
      %s22 = sadd.s32 %s15, 1
      %s23 = ssub.s32 %s15, %s22
      %p24 = scmp.eq.s32.totalorder %s23, 0
      %s26 = sadd.s32 %s25, 1
      %s27 = scalar_select %p24, %s25, %s26
      %p30 = pneg %p24
      %p31 = scmp.eq.s32.totalorder %s15, 2
      %p32 = por %p30, %p31
      %p33 = scmp.ne.s32.totalorder %s25, %s28
      %p34 = scmp.eq.s32.totalorder %s15, 0
      %p35 = por %p33, %p34
      %p36 = scmp.ne.s32.totalorder %s25, %s28
      %p37 = scmp.eq.s32.totalorder %s20, 2
      %p38 = por %p36, %p37
      %p39 = scmp.ne.s32.totalorder %s28, %s29
      %p40 = scmp.eq.s32.totalorder %s20, 0
      %p41 = por %p39, %p40
      %p42 = scmp.ne.s32.totalorder %s28, %s29
      %p43 = scmp.eq.s32.totalorder %s21, 2
      %p44 = por %p42, %p43
      %p46 = scmp.ne.s32.totalorder %s29, %s45
      %p47 = scmp.eq.s32.totalorder %s21, 0
      %p48 = por %p46, %p47
      %s50 = sadd.s32 %s49, 1
      %p53 = scmp.eq.s32.totalorder %s15, 2
      %p54 = scmp.ne.s32.totalorder %s49, %s51
      %p55 = scmp.eq.s32.totalorder %s15, 0
      %p56 = por %p54, %p55
      %p57 = scmp.ne.s32.totalorder %s49, %s51
      %p58 = scmp.eq.s32.totalorder %s20, 2
      %p59 = por %p57, %p58
      %p60 = scmp.ne.s32.totalorder %s51, %s52
      %p61 = scmp.eq.s32.totalorder %s20, 0
      %p62 = por %p60, %p61
      %p63 = scmp.ne.s32.totalorder %s51, %s52
      %p64 = scmp.eq.s32.totalorder %s21, 2
      %p65 = por %p63, %p64
      %p67 = scmp.ne.s32.totalorder %s52, %s66
      %p68 = scmp.eq.s32.totalorder %s21, 0
      %p69 = por %p67, %p68
      %s71 = sadd.s32 %s70, 1
      %p74 = scmp.eq.s32.totalorder %s15, 2
      %p75 = scmp.ne.s32.totalorder %s70, %s72
      %p76 = scmp.eq.s32.totalorder %s15, 0
      %p77 = por %p75, %p76
      %p78 = scmp.ne.s32.totalorder %s70, %s72
      %p79 = scmp.eq.s32.totalorder %s20, 2
      %p80 = por %p78, %p79
      %p81 = scmp.ne.s32.totalorder %s72, %s73
      %p82 = scmp.eq.s32.totalorder %s20, 0
      %p83 = por %p81, %p82
      %p84 = scmp.ne.s32.totalorder %s72, %s73
      %p85 = scmp.eq.s32.totalorder %s21, 2
      %p86 = por %p84, %p85
      %p88 = scmp.ne.s32.totalorder %s73, %s87
      %p89 = scmp.eq.s32.totalorder %s21, 0
      %p90 = por %p88, %p89
      %s92 = sadd.s32 %s91, 1
      %p95 = scmp.eq.s32.totalorder %s15, 2
      %p96 = scmp.ne.s32.totalorder %s91, %s93
      %p97 = scmp.eq.s32.totalorder %s15, 0
      %p98 = por %p96, %p97
      %p99 = scmp.ne.s32.totalorder %s91, %s93
      %p100 = scmp.eq.s32.totalorder %s20, 2
      %p101 = por %p99, %p100
      %p102 = scmp.ne.s32.totalorder %s93, %s94
      %p103 = scmp.eq.s32.totalorder %s20, 0
      %p104 = por %p102, %p103
      %p105 = scmp.ne.s32.totalorder %s93, %s94
      %p106 = scmp.eq.s32.totalorder %s21, 2
      %p107 = por %p105, %p106
      %p109 = scmp.ne.s32.totalorder %s94, %s108
      %p110 = scmp.eq.s32.totalorder %s21, 0
      %p111 = por %p109, %p110
      %s113 = sadd.s32 %s112, 1
      %p116 = scmp.eq.s32.totalorder %s15, 2
      %p117 = scmp.ne.s32.totalorder %s112, %s114
      %p118 = scmp.eq.s32.totalorder %s15, 0
      %p119 = por %p117, %p118
      %p120 = scmp.ne.s32.totalorder %s112, %s114
      %p121 = scmp.eq.s32.totalorder %s20, 2
      %p122 = por %p120, %p121
      %p123 = scmp.ne.s32.totalorder %s114, %s115
      %p124 = scmp.eq.s32.totalorder %s20, 0
      %p125 = por %p123, %p124
      %p126 = scmp.ne.s32.totalorder %s114, %s115
      %p127 = scmp.eq.s32.totalorder %s21, 2
      %p128 = por %p126, %p127
      %p130 = scmp.ne.s32.totalorder %s115, %s129
      %p131 = scmp.eq.s32.totalorder %s21, 0
      %p132 = por %p130, %p131
      %s134 = sadd.s32 %s133, 1
      %p137 = scmp.eq.s32.totalorder %s15, 2
      %p138 = scmp.ne.s32.totalorder %s133, %s135
      %p139 = scmp.eq.s32.totalorder %s15, 0
      %p140 = por %p138, %p139
      %p141 = scmp.ne.s32.totalorder %s133, %s135
      %p142 = scmp.eq.s32.totalorder %s20, 2
      %p143 = por %p141, %p142
      %p144 = scmp.ne.s32.totalorder %s135, %s136
      %p145 = scmp.eq.s32.totalorder %s20, 0
      %p146 = por %p144, %p145
      %p147 = scmp.ne.s32.totalorder %s135, %s136
      %p148 = scmp.eq.s32.totalorder %s21, 2
      %p149 = por %p147, %p148
      %p151 = scmp.ne.s32.totalorder %s136, %s150
      %p152 = scmp.eq.s32.totalorder %s21, 0
      %p153 = por %p151, %p152
      %s154 = ssub.s32 %s15, %s22
      %p155 = scmp.eq.s32.totalorder %s154, 0
      %s157 = sadd.s32 %s156, 1
      %s158 = scalar_select %p155, %s156, %s157
      %p161 = pneg %p155
      %p162 = scmp.eq.s32.totalorder %s15, 2
      %p163 = por %p161, %p162
      %p164 = scmp.ne.s32.totalorder %s156, %s159
      %p165 = scmp.eq.s32.totalorder %s15, 0
      %p166 = por %p164, %p165
      %p167 = scmp.ne.s32.totalorder %s156, %s159
      %p168 = scmp.eq.s32.totalorder %s20, 2
      %p169 = por %p167, %p168
      %p170 = scmp.ne.s32.totalorder %s159, %s160
      %p171 = scmp.eq.s32.totalorder %s20, 0
      %p172 = por %p170, %p171
      %p173 = scmp.ne.s32.totalorder %s159, %s160
      %p174 = scmp.eq.s32.totalorder %s21, 2
      %p175 = por %p173, %p174
      %p177 = scmp.ne.s32.totalorder %s160, %s176
      %p178 = scmp.eq.s32.totalorder %s21, 0
      %p179 = por %p177, %p178
      %p180 = scmp.le.s32.totalorder 1, %s15
      %p181 = scmp.lt.s32.totalorder %s15, 4
      %p182 = pnand %p180, %p181
      %p183 = pneg %p182
      // Predicated region
      $region9: #{tpu_custom_call.1} parent=5 // pred_check
        _
      $region10: #{tpu_custom_call.1} parent=5 // pred_check_branch
        %185 = sbr.rel (%p182) target = $region12
      $region11: #{tpu_custom_call.1} parent=5 // pred_region
        %s186 = ssub.s32 %s15, 1
        // Predicated region
        $region13: #{tpu_custom_call.1} parent=11 // pred_check
          %p187 = pneg %p62
        $region14: #{tpu_custom_call.1} parent=11 // pred_check_branch
          %189 = sbr.rel (%p187) target = $region16
        $region15: #{tpu_custom_call.1} parent=11 // pred_region
          _
        $region16: #{tpu_custom_call.1} parent=11 // pred_fallthru
          _
        // Predicated region
        $region17: #{tpu_custom_call.1} parent=11 // pred_check
          %p190 = pneg %p83
        $region18: #{tpu_custom_call.1} parent=11 // pred_check_branch
          %192 = sbr.rel (%p190) target = $region20
        $region19: #{tpu_custom_call.1} parent=11 // pred_region
          _
        $region20: #{tpu_custom_call.1} parent=11 // pred_fallthru
          _
        // Predicated region
        $region21: #{tpu_custom_call.1} parent=11 // pred_check
          %p193 = pneg %p104
        $region22: #{tpu_custom_call.1} parent=11 // pred_check_branch
          %195 = sbr.rel (%p193) target = $region24
        $region23: #{tpu_custom_call.1} parent=11 // pred_region
          _
        $region24: #{tpu_custom_call.1} parent=11 // pred_fallthru
          _
        // Predicated region
        $region25: #{tpu_custom_call.1} parent=11 // pred_check
          %p196 = pneg %p125
        $region26: #{tpu_custom_call.1} parent=11 // pred_check_branch
          %198 = sbr.rel (%p196) target = $region28
        $region27: #{tpu_custom_call.1} parent=11 // pred_region
          _
        $region28: #{tpu_custom_call.1} parent=11 // pred_fallthru
          _
        // Predicated region
        $region29: #{tpu_custom_call.1} parent=11 // pred_check
          %p199 = pneg %p146
        $region30: #{tpu_custom_call.1} parent=11 // pred_check_branch
          %201 = sbr.rel (%p199) target = $region32
        $region31: #{tpu_custom_call.1} parent=11 // pred_region
          _
        $region32: #{tpu_custom_call.1} parent=11 // pred_fallthru
          _
      $region12: #{tpu_custom_call.1} parent=5 // pred_fallthru
        _
      %p202 = scmp.lt.s32.totalorder %s15, 3
      // Predicated region
      $region33: #{tpu_custom_call.1} parent=5 // pred_check
        %p203 = pneg %p202
      $region34: #{tpu_custom_call.1} parent=5 // pred_check_branch
        %205 = sbr.rel (%p203) target = $region36
      $region35: #{tpu_custom_call.1} parent=5 // pred_region
        // Predicated region
        $region37: #{tpu_custom_call.1} parent=35 // pred_check
          %p206 = pneg %p35
        $region38: #{tpu_custom_call.1} parent=35 // pred_check_branch
          %208 = sbr.rel (%p206) target = $region40
        $region39: #{tpu_custom_call.1} parent=35 // pred_region
          %s209 = sand.u32 %s25, 1
          %s210 = sand.u32 %s25, 1
          %s211 = smul.addr %s210, 8
          %s212 = scalar_lea.vmem [#allocation2], %s211
          %s213 = smul.addr %s15, 4
          %s214 = scalar_lea.vmem %s0, %s213
          // Predicated region
          $region41: #{tpu_custom_call.1} parent=39 // pred_check
            _
          $region42: #{tpu_custom_call.1} parent=39 // pred_check_branch
            %216 = sbr.rel (0) target = $region44
          $region43: #{tpu_custom_call.1} parent=39 // pred_region
            // Predicated region
            $region45: #{tpu_custom_call.1} parent=43 // pred_check
              _
            $region46: #{tpu_custom_call.1} parent=43 // pred_check_branch
              %218 = sbr.rel target = $region48
            $region47: #{tpu_custom_call.1} parent=43 // pred_region
              // Predicated region
              $region60: #{tpu_custom_call.1} parent=47 // pred_check
                _
              $region61: #{tpu_custom_call.1} parent=47 // pred_check_branch
                %235 = sbr.rel (0) target = $region63
              $region62: #{tpu_custom_call.1} parent=47 // pred_region
                loop: start=0, step=1, limit=1
                $region64: #{tpu_custom_call.1} parent=62 // loop_pre_header
                  _
                $region65: #{tpu_custom_call.1} parent=62 // loop_header
                  %s237 = sphi 0, %s241
                  %p238 = scmp.ge.s32.totalorder %s237, 1
                  %s242 = sphi %s214, %s214
                  %s243 = sphi %s212, %s212
                $region66: #{tpu_custom_call.1} parent=62 // loop_header_branch
                  %240 = sbr.rel (%p238) target = $region70
                $region67: #{tpu_custom_call.1} parent=62 // loop_body
                  _
                $region68: #{tpu_custom_call.1} parent=62 // loop_footer
                  %s241 = sadd.s32 1, %s237
                $region69: #{tpu_custom_call.1} parent=62 // loop_footer_branch
                  %236 = sbr.rel target = $region65
                $region70: #{tpu_custom_call.1} parent=62 // loop_exit
                  _
                loop: start=0, step=1, limit=1
                $region71: #{tpu_custom_call.1} parent=62 // loop_pre_header
                  _
                $region72: #{tpu_custom_call.1} parent=62 // loop_header
                  %s246 = sphi 0, %s250
                  %p247 = scmp.ge.s32.totalorder %s246, 1
                  %s251 = sphi %s214, %s214
                  %s252 = sphi %s212, %s212
                $region73: #{tpu_custom_call.1} parent=62 // loop_header_branch
                  %249 = sbr.rel (%p247) target = $region77
                $region74: #{tpu_custom_call.1} parent=62 // loop_body
                  %v253 = vld [vmem:[%s251] sm:$0xf]
                  %254 = vst [vmem:[%s252] sm:$0xf] %v253
                  %v255 = vld [vmem:[%s251 + $0xc] sm:$0xf]
                  %256 = vst [vmem:[%s252 + $0x4] sm:$0xf] %v255
                $region75: #{tpu_custom_call.1} parent=62 // loop_footer
                  %s250 = sadd.s32 1, %s246
                $region76: #{tpu_custom_call.1} parent=62 // loop_footer_branch
                  %245 = sbr.rel target = $region72
                $region77: #{tpu_custom_call.1} parent=62 // loop_exit
                  _
              $region63: #{tpu_custom_call.1} parent=47 // pred_fallthru
                _
            $region48: #{tpu_custom_call.1} parent=43 // pred_fallthru
              _
            // Predicated region
            $region49: #{tpu_custom_call.1} parent=43 // pred_check
              _
            $region50: #{tpu_custom_call.1} parent=43 // pred_check_branch
              %220 = sbr.rel (0) target = $region52
            $region51: #{tpu_custom_call.1} parent=43 // pred_region
              loop: start=0, step=1, limit=1
              $region53: #{tpu_custom_call.1} parent=51 // loop_pre_header
                _
              $region54: #{tpu_custom_call.1} parent=51 // loop_header
                %s223 = sphi 0, %s227
                %p224 = scmp.ge.s32.totalorder %s223, 1
                %s228 = sphi %s214, %s214
                %s229 = sphi %s212, %s212
              $region55: #{tpu_custom_call.1} parent=51 // loop_header_branch
                %226 = sbr.rel (%p224) target = $region59
              $region56: #{tpu_custom_call.1} parent=51 // loop_body
                %v230 = vld [vmem:[%s228] sm:$0xf]
                %231 = vst [vmem:[%s229] sm:$0xf] %v230
                %v232 = vld [vmem:[%s228 + $0xc] sm:$0xf]
                %233 = vst [vmem:[%s229 + $0x4] sm:$0xf] %v232
              $region57: #{tpu_custom_call.1} parent=51 // loop_footer
                %s227 = sadd.s32 1, %s223
              $region58: #{tpu_custom_call.1} parent=51 // loop_footer_branch
                %222 = sbr.rel target = $region54
              $region59: #{tpu_custom_call.1} parent=51 // loop_exit
                _
            $region52: #{tpu_custom_call.1} parent=43 // pred_fallthru
              _
          $region44: #{tpu_custom_call.1} parent=39 // pred_fallthru
            _
          %257 = vnop
        $region40: #{tpu_custom_call.1} parent=35 // pred_fallthru
          _
      $region36: #{tpu_custom_call.1} parent=5 // pred_fallthru
        _
      %p258 = scmp.le.s32.totalorder 1, %s15
      %p259 = scmp.lt.s32.totalorder %s15, 4
      %p260 = pnand %p258, %p259
      %p261 = pneg %p260
      // Predicated region
      $region78: #{tpu_custom_call.1} parent=5 // pred_check
        _
      $region79: #{tpu_custom_call.1} parent=5 // pred_check_branch
        %263 = sbr.rel (%p260) target = $region81
      $region80: #{tpu_custom_call.1} parent=5 // pred_region
        %s264 = ssub.s32 %s15, 1
        %s265 = sand.u32 %s28, 1
        %s266 = sand.u32 %s28, 1
        %s267 = smul.addr %s266, 8
        %s268 = scalar_lea.vmem [#allocation2], %s267
        // Predicated region
        $region82: #{tpu_custom_call.1} parent=80 // pred_check
          %p269 = pneg %p41
        $region83: #{tpu_custom_call.1} parent=80 // pred_check_branch
          %271 = sbr.rel (%p269) target = $region85
        $region84: #{tpu_custom_call.1} parent=80 // pred_region
          _
        $region85: #{tpu_custom_call.1} parent=80 // pred_fallthru
          _
        %s272 = sand.u32 %s28, 1
        %s273 = sand.u32 %s28, 1
        %s274 = smul.addr %s273, 8
        %s275 = scalar_lea.vmem [#allocation2], %s274
        %p276 = pneg %p41
        %p277 = pneg %p38
        %p278 = pneg %p62
        %p279 = pneg %p59
        %p280 = pneg %p83
        %p281 = pneg %p80
        %p282 = pneg %p104
        %p283 = pneg %p101
        %p284 = pneg %p125
        %p285 = pneg %p122
        %p286 = pneg %p146
        %p287 = pneg %p143
        %p288 = pneg %p172
        %p289 = pneg %p169
        %s290 = sand.u32 %s159, 1
        %s291 = scalar_lea.sflag [#allocation4], %s290
        %s292 = sand.u32 %s159, 1
        %s293 = smul.addr %s292, 8
        %s294 = scalar_lea.vmem [#allocation3], %s293
        %v296 = vld [vmem:[%s268] sm:$0xf]
        %v297 = vld [vmem:[%s268 + $0x4] sm:$0xf]
        %v298 = vld [vmem:[%s5] sm:$0xff]
        %v299 = vld [vmem:[%s5 + $0x8] sm:$0xff]
        %v300 = vld [vmem:[%s5 + $0x10] sm:$0xff]
        %v301 = vld [vmem:[%s5 + $0x18] sm:$0xff]
        %v302 = vld [vmem:[%s5 + $0x20] sm:$0xff]
        %v303 = vld [vmem:[%s5 + $0x28] sm:$0xff]
        %v304 = vld [vmem:[%s5 + $0x30] sm:$0xff]
        %v305 = vld [vmem:[%s5 + $0x38] sm:$0xff]
        %v306 = vld [vmem:[%s5 + $0x40] sm:$0xff]
        %v307 = vld [vmem:[%s5 + $0x48] sm:$0xff]
        %v308 = vld [vmem:[%s5 + $0x50] sm:$0xff]
        %v309 = vld [vmem:[%s5 + $0x58] sm:$0xff]
        %v310 = vld [vmem:[%s5 + $0x60] sm:$0xff]
        %v311 = vld [vmem:[%s5 + $0x68] sm:$0xff]
        %v312 = vld [vmem:[%s5 + $0x70] sm:$0xff]
        %v313 = vld [vmem:[%s5 + $0x78] sm:$0xff]
        %v314 = vld [vmem:[%s1] sm:$0xf]
        %v315 = vld [vmem:[%s1 + $0x4] sm:$0xf]
        %v316 = vld [vmem:[%s1 + $0x8] sm:$0xf]
        %v317 = vld [vmem:[%s1 + $0xc] sm:$0xf]
        %v318 = vld [vmem:[%s1 + $0x10] sm:$0xf]
        %v319 = vld [vmem:[%s1 + $0x14] sm:$0xf]
        %v320 = vld [vmem:[%s1 + $0x18] sm:$0xf]
        %v321 = vld [vmem:[%s1 + $0x1c] sm:$0xf]
        %v322 = vld [vmem:[%s1 + $0x20] sm:$0xf]
        %v323 = vld [vmem:[%s1 + $0x24] sm:$0xf]
        %v324 = vld [vmem:[%s1 + $0x28] sm:$0xf]
        %v325 = vld [vmem:[%s1 + $0x2c] sm:$0xf]
        %v326 = vld [vmem:[%s1 + $0x30] sm:$0xf]
        %v327 = vld [vmem:[%s1 + $0x34] sm:$0xf]
        %v328 = vld [vmem:[%s1 + $0x38] sm:$0xf]
        %v329 = vld [vmem:[%s1 + $0x3c] sm:$0xf]
        %331 = vset.pattern.permute.xlu0 0
        %332 = vperm.xlu0 %331, %v298
        %v333 = vpop.permute.xlu0 %332
        %336 = vset.pattern.permute.xlu0 0
        %337 = vperm.xlu0 %336, %v299
        %v338 = vpop.permute.xlu0 %337
        %341 = vset.pattern.permute.xlu0 0
        %342 = vperm.xlu0 %341, %v300
        %v343 = vpop.permute.xlu0 %342
        %346 = vset.pattern.permute.xlu0 0
        %347 = vperm.xlu0 %346, %v301
        %v348 = vpop.permute.xlu0 %347
        %351 = vset.pattern.permute.xlu0 0
        %352 = vperm.xlu0 %351, %v302
        %v353 = vpop.permute.xlu0 %352
        %356 = vset.pattern.permute.xlu0 0
        %357 = vperm.xlu0 %356, %v303
        %v358 = vpop.permute.xlu0 %357
        %361 = vset.pattern.permute.xlu0 0
        %362 = vperm.xlu0 %361, %v304
        %v363 = vpop.permute.xlu0 %362
        %366 = vset.pattern.permute.xlu0 0
        %367 = vperm.xlu0 %366, %v305
        %v368 = vpop.permute.xlu0 %367
        %371 = vset.pattern.permute.xlu0 0
        %372 = vperm.xlu0 %371, %v306
        %v373 = vpop.permute.xlu0 %372
        %376 = vset.pattern.permute.xlu0 0
        %377 = vperm.xlu0 %376, %v307
        %v378 = vpop.permute.xlu0 %377
        %381 = vset.pattern.permute.xlu0 0
        %382 = vperm.xlu0 %381, %v308
        %v383 = vpop.permute.xlu0 %382
        %386 = vset.pattern.permute.xlu0 0
        %387 = vperm.xlu0 %386, %v309
        %v388 = vpop.permute.xlu0 %387
        %391 = vset.pattern.permute.xlu0 0
        %392 = vperm.xlu0 %391, %v310
        %v393 = vpop.permute.xlu0 %392
        %396 = vset.pattern.permute.xlu0 0
        %397 = vperm.xlu0 %396, %v311
        %v398 = vpop.permute.xlu0 %397
        %401 = vset.pattern.permute.xlu0 0
        %402 = vperm.xlu0 %401, %v312
        %v403 = vpop.permute.xlu0 %402
        %406 = vset.pattern.permute.xlu0 0
        %407 = vperm.xlu0 %406, %v313
        %v408 = vpop.permute.xlu0 %407
        %v426 = vunpack.c.l.b16 %v314
        %v427 = vunpack.c.l.b16 %v315
        %v428 = vunpack.c.l.b16 %v316
        %v429 = vunpack.c.l.b16 %v317
        %v430 = vunpack.c.l.b16 %v318
        %v431 = vunpack.c.l.b16 %v319
        %v432 = vunpack.c.l.b16 %v320
        %v433 = vunpack.c.l.b16 %v321
        %v434 = vunpack.c.l.b16 %v322
        %v435 = vunpack.c.l.b16 %v323
        %v436 = vunpack.c.l.b16 %v324
        %v437 = vunpack.c.l.b16 %v325
        %v438 = vunpack.c.l.b16 %v326
        %v439 = vunpack.c.l.b16 %v327
        %v440 = vunpack.c.l.b16 %v328
        %v441 = vunpack.c.l.b16 %v329
        %v442 = vpack.c.b16 %v427, %v426
        %v443 = vpack.c.b16 %v429, %v428
        %v444 = vpack.c.b16 %v431, %v430
        %v445 = vpack.c.b16 %v433, %v432
        %v446 = vpack.c.b16 %v435, %v434
        %v447 = vpack.c.b16 %v437, %v436
        %v448 = vpack.c.b16 %v439, %v438
        %v449 = vpack.c.b16 %v441, %v440
        %v452 = vunpack.c.l.b16 %v296
        %v453 = vunpack.c.l.b16 %v297
        %v454 = vpack.c.b16 %v453, %v452
        %vm456 = vcmask 130048
        %v458 = vsel %vm456, %v442, 0
        %v461 = vsel %vm456, %v443, 0
        %v464 = vsel %vm456, %v444, 0
        %v467 = vsel %vm456, %v445, 0
        %v470 = vsel %vm456, %v446, 0
        %v473 = vsel %vm456, %v447, 0
        %v476 = vsel %vm456, %v448, 0
        %v479 = vsel %vm456, %v449, 0
        %481 = vmatprep.subr.bf16.mxu0 0
        %482 = vmatpush1.bf16.msra.mxu0 %v454
        %483 = vmatprep.subr.bf16.mxu0 0
        %484 = vmatpush1.bf16.msra.mxu0 0
        %485 = vmatprep.subr.bf16.mxu0 0
        %486 = vmatpush1.bf16.msra.mxu0 0
        %487 = vmatprep.subr.bf16.mxu0 0
        %488 = vmatpush1.bf16.msra.mxu0 0
        %489 = vmatprep.subr.bf16.mxu0 0
        %490 = vmatpush1.bf16.msra.mxu0 0
        %491 = vmatprep.subr.bf16.mxu0 0
        %492 = vmatpush1.bf16.msra.mxu0 0
        %493 = vmatprep.subr.bf16.mxu0 0
        %494 = vmatpush1.bf16.msra.mxu0 0
        %495 = vmatprep.subr.bf16.mxu0 0
        %496 = vmatpush1.bf16.msra.mxu0 0
        %497 = vmatprep.subr.bf16.mxu0 0
        %498 = vmatpush1.bf16.msra.mxu0 0
        %499 = vmatprep.subr.bf16.mxu0 0
        %500 = vmatpush1.bf16.msra.mxu0 0
        %501 = vmatprep.subr.bf16.mxu0 0
        %502 = vmatpush1.bf16.msra.mxu0 0
        %503 = vmatprep.subr.bf16.mxu0 0
        %504 = vmatpush1.bf16.msra.mxu0 0
        %505 = vmatprep.subr.bf16.mxu0 0
        %506 = vmatpush1.bf16.msra.mxu0 0
        %507 = vmatprep.subr.bf16.mxu0 0
        %508 = vmatpush1.bf16.msra.mxu0 0
        %509 = vmatprep.subr.bf16.mxu0 0
        %510 = vmatpush1.bf16.msra.mxu0 0
        %511 = vmatprep.subr.bf16.mxu0 0
        %512 = vmatpush1.bf16.msra.mxu0 0
        %513 = vmatprep.mubr.bf16.mxu0 0
        %514 = vmatmul.mubr.bf16.gmra.mrb[0].mxu0 %v458
        %v515 = vpop.f32.mrb[0].mxu0
        %v516 = vadd.f32 %v333, %v515
        %v517 = vpop.f32.mrb[0].mxu0
        %v518 = vpop.f32.mrb[0].mxu0
        %v519 = vadd.f32 %v338, %v518
        %v520 = vpop.f32.mrb[0].mxu0
        %521 = vmatprep.mubr.bf16.mxu0 0
        %522 = vmatmul.mubr.bf16.gmra.mrb[0].mxu0 %v461
        %v523 = vpop.f32.mrb[0].mxu0
        %v524 = vadd.f32 %v343, %v523
        %v525 = vpop.f32.mrb[0].mxu0
        %v526 = vpop.f32.mrb[0].mxu0
        %v527 = vadd.f32 %v348, %v526
        %v528 = vpop.f32.mrb[0].mxu0
        %529 = vmatprep.mubr.bf16.mxu0 0
        %530 = vmatmul.mubr.bf16.gmra.mrb[0].mxu0 %v464
        %v531 = vpop.f32.mrb[0].mxu0
        %v532 = vadd.f32 %v353, %v531
        %v533 = vpop.f32.mrb[0].mxu0
        %v534 = vpop.f32.mrb[0].mxu0
        %v535 = vadd.f32 %v358, %v534
        %v536 = vpop.f32.mrb[0].mxu0
        %537 = vmatprep.mubr.bf16.mxu0 0
        %538 = vmatmul.mubr.bf16.gmra.mrb[0].mxu0 %v467
        %v539 = vpop.f32.mrb[0].mxu0
        %v540 = vadd.f32 %v363, %v539
        %v541 = vpop.f32.mrb[0].mxu0
        %v542 = vpop.f32.mrb[0].mxu0
        %v543 = vadd.f32 %v368, %v542
        %v544 = vpop.f32.mrb[0].mxu0
        %545 = vmatprep.mubr.bf16.mxu0 0
        %546 = vmatmul.mubr.bf16.gmra.mrb[0].mxu0 %v470
        %v547 = vpop.f32.mrb[0].mxu0
        %v548 = vadd.f32 %v373, %v547
        %v549 = vpop.f32.mrb[0].mxu0
        %v550 = vpop.f32.mrb[0].mxu0
        %v551 = vadd.f32 %v378, %v550
        %v552 = vpop.f32.mrb[0].mxu0
        %553 = vmatprep.mubr.bf16.mxu0 0
        %554 = vmatmul.mubr.bf16.gmra.mrb[0].mxu0 %v473
        %v555 = vpop.f32.mrb[0].mxu0
        %v556 = vadd.f32 %v383, %v555
        %v557 = vpop.f32.mrb[0].mxu0
        %v558 = vpop.f32.mrb[0].mxu0
        %v559 = vadd.f32 %v388, %v558
        %v560 = vpop.f32.mrb[0].mxu0
        %561 = vmatprep.mubr.bf16.mxu0 0
        %562 = vmatmul.mubr.bf16.gmra.mrb[0].mxu0 %v476
        %v563 = vpop.f32.mrb[0].mxu0
        %v564 = vadd.f32 %v393, %v563
        %v565 = vpop.f32.mrb[0].mxu0
        %v566 = vpop.f32.mrb[0].mxu0
        %v567 = vadd.f32 %v398, %v566
        %v568 = vpop.f32.mrb[0].mxu0
        %569 = vmatprep.mubr.bf16.mxu0 0
        %570 = vmatmul.mubr.bf16.gmra.mrb[0].mxu0 %v479
        %v571 = vpop.f32.mrb[0].mxu0
        %v572 = vadd.f32 %v403, %v571
        %v573 = vpop.f32.mrb[0].mxu0
        %v574 = vpop.f32.mrb[0].mxu0
        %v575 = vadd.f32 %v408, %v574
        %v576 = vpop.f32.mrb[0].mxu0
        %577 = vdwg.mxu0
        %v578 = vmax.f32 %v516, 0.0
        %v579 = vmax.f32 %v519, 0.0
        %v580 = vmax.f32 %v524, 0.0
        %v581 = vmax.f32 %v527, 0.0
        %v582 = vmax.f32 %v532, 0.0
        %v583 = vmax.f32 %v535, 0.0
        %v584 = vmax.f32 %v540, 0.0
        %v585 = vmax.f32 %v543, 0.0
        %v586 = vmax.f32 %v548, 0.0
        %v587 = vmax.f32 %v551, 0.0
        %v588 = vmax.f32 %v556, 0.0
        %v589 = vmax.f32 %v559, 0.0
        %v590 = vmax.f32 %v564, 0.0
        %v591 = vmax.f32 %v567, 0.0
        %v592 = vmax.f32 %v572, 0.0
        %v593 = vmax.f32 %v575, 0.0
        %v594 = vpack.c.bf16 %v579, %v578
        %v595 = vpack.c.bf16 %v581, %v580
        %v596 = vpack.c.bf16 %v583, %v582
        %v597 = vpack.c.bf16 %v585, %v584
        %v598 = vpack.c.bf16 %v587, %v586
        %v599 = vpack.c.bf16 %v589, %v588
        %v600 = vpack.c.bf16 %v591, %v590
        %v601 = vpack.c.bf16 %v593, %v592
        %v602 = vld [vmem:[%s2] sm:$0xf]
        %v603 = vld [vmem:[%s2 + $0x4] sm:$0xf]
        %v604 = vld [vmem:[%s2 + $0x8] sm:$0xf]
        %v605 = vld [vmem:[%s2 + $0xc] sm:$0xf]
        %v606 = vld [vmem:[%s2 + $0x10] sm:$0xf]
        %v607 = vld [vmem:[%s2 + $0x14] sm:$0xf]
        %v608 = vld [vmem:[%s2 + $0x18] sm:$0xf]
        %v609 = vld [vmem:[%s2 + $0x1c] sm:$0xf]
        %v610 = vld [vmem:[%s2 + $0x20] sm:$0xf]
        %v611 = vld [vmem:[%s2 + $0x24] sm:$0xf]
        %v612 = vld [vmem:[%s2 + $0x28] sm:$0xf]
        %v613 = vld [vmem:[%s2 + $0x2c] sm:$0xf]
        %v614 = vld [vmem:[%s2 + $0x30] sm:$0xf]
        %v615 = vld [vmem:[%s2 + $0x34] sm:$0xf]
        %v616 = vld [vmem:[%s2 + $0x38] sm:$0xf]
        %v617 = vld [vmem:[%s2 + $0x3c] sm:$0xf]
        %618 = vset.pattern.permute.xlu0 1
        %619 = vperm.xlu0 %618, %v298
        %v620 = vpop.permute.xlu0 %619
        %622 = vset.pattern.permute.xlu0 1
        %623 = vperm.xlu0 %622, %v299
        %v624 = vpop.permute.xlu0 %623
        %626 = vset.pattern.permute.xlu0 1
        %627 = vperm.xlu0 %626, %v300
        %v628 = vpop.permute.xlu0 %627
        %630 = vset.pattern.permute.xlu0 1
        %631 = vperm.xlu0 %630, %v301
        %v632 = vpop.permute.xlu0 %631
        %634 = vset.pattern.permute.xlu0 1
        %635 = vperm.xlu0 %634, %v302
        %v636 = vpop.permute.xlu0 %635
        %638 = vset.pattern.permute.xlu0 1
        %639 = vperm.xlu0 %638, %v303
        %v640 = vpop.permute.xlu0 %639
        %642 = vset.pattern.permute.xlu0 1
        %643 = vperm.xlu0 %642, %v304
        %v644 = vpop.permute.xlu0 %643
        %646 = vset.pattern.permute.xlu0 1
        %647 = vperm.xlu0 %646, %v305
        %v648 = vpop.permute.xlu0 %647
        %650 = vset.pattern.permute.xlu0 1
        %651 = vperm.xlu0 %650, %v306
        %v652 = vpop.permute.xlu0 %651
        %654 = vset.pattern.permute.xlu0 1
        %655 = vperm.xlu0 %654, %v307
        %v656 = vpop.permute.xlu0 %655
        %658 = vset.pattern.permute.xlu0 1
        %659 = vperm.xlu0 %658, %v308
        %v660 = vpop.permute.xlu0 %659
        %662 = vset.pattern.permute.xlu0 1
        %663 = vperm.xlu0 %662, %v309
        %v664 = vpop.permute.xlu0 %663
        %666 = vset.pattern.permute.xlu0 1
        %667 = vperm.xlu0 %666, %v310
        %v668 = vpop.permute.xlu0 %667
        %670 = vset.pattern.permute.xlu0 1
        %671 = vperm.xlu0 %670, %v311
        %v672 = vpop.permute.xlu0 %671
        %674 = vset.pattern.permute.xlu0 1
        %675 = vperm.xlu0 %674, %v312
        %v676 = vpop.permute.xlu0 %675
        %678 = vset.pattern.permute.xlu0 1
        %679 = vperm.xlu0 %678, %v313
        %v680 = vpop.permute.xlu0 %679
        %v698 = vunpack.c.l.b16 %v602
        %v699 = vunpack.c.l.b16 %v603
        %v700 = vunpack.c.l.b16 %v604
        %v701 = vunpack.c.l.b16 %v605
        %v702 = vunpack.c.l.b16 %v606
        %v703 = vunpack.c.l.b16 %v607
        %v704 = vunpack.c.l.b16 %v608
        %v705 = vunpack.c.l.b16 %v609
        %v706 = vunpack.c.l.b16 %v610
        %v707 = vunpack.c.l.b16 %v611
        %v708 = vunpack.c.l.b16 %v612
        %v709 = vunpack.c.l.b16 %v613
        %v710 = vunpack.c.l.b16 %v614
        %v711 = vunpack.c.l.b16 %v615
        %v712 = vunpack.c.l.b16 %v616
        %v713 = vunpack.c.l.b16 %v617
        %v714 = vpack.c.b16 %v699, %v698
        %v715 = vpack.c.b16 %v701, %v700
        %v716 = vpack.c.b16 %v703, %v702
        %v717 = vpack.c.b16 %v705, %v704
        %v718 = vpack.c.b16 %v707, %v706
        %v719 = vpack.c.b16 %v709, %v708
        %v720 = vpack.c.b16 %v711, %v710
        %v721 = vpack.c.b16 %v713, %v712
        %730 = vmatprep.subr.bf16.mxu0 0
        %731 = vmatpush1.bf16.msra.mxu0 %v594
        %732 = vmatprep.subr.bf16.mxu0 0
        %733 = vmatpush1.bf16.msra.mxu0 %v595
        %734 = vmatprep.subr.bf16.mxu0 0
        %735 = vmatpush1.bf16.msra.mxu0 %v596
        %736 = vmatprep.subr.bf16.mxu0 0
        %737 = vmatpush1.bf16.msra.mxu0 %v597
        %738 = vmatprep.subr.bf16.mxu0 0
        %739 = vmatpush1.bf16.msra.mxu0 %v598
        %740 = vmatprep.subr.bf16.mxu0 0
        %741 = vmatpush1.bf16.msra.mxu0 %v599
        %742 = vmatprep.subr.bf16.mxu0 0
        %743 = vmatpush1.bf16.msra.mxu0 %v600
        %744 = vmatprep.subr.bf16.mxu0 0
        %745 = vmatpush1.bf16.msra.mxu0 %v601
        %746 = vmatprep.subr.bf16.mxu0 0
        %747 = vmatpush1.bf16.msra.mxu0 0
        %748 = vmatprep.subr.bf16.mxu0 0
        %749 = vmatpush1.bf16.msra.mxu0 0
        %750 = vmatprep.subr.bf16.mxu0 0
        %751 = vmatpush1.bf16.msra.mxu0 0
        %752 = vmatprep.subr.bf16.mxu0 0
        %753 = vmatpush1.bf16.msra.mxu0 0
        %754 = vmatprep.subr.bf16.mxu0 0
        %755 = vmatpush1.bf16.msra.mxu0 0
        %756 = vmatprep.subr.bf16.mxu0 0
        %757 = vmatpush1.bf16.msra.mxu0 0
        %758 = vmatprep.subr.bf16.mxu0 0
        %759 = vmatpush1.bf16.msra.mxu0 0
        %760 = vmatprep.subr.bf16.mxu0 0
        %761 = vmatpush1.bf16.msra.mxu0 0
        %762 = vmatprep.mubr.bf16.mxu0 0
        %763 = vmatmul.mubr.bf16.gmra.mrb[0].mxu0 %v714
        %v764 = vpop.f32.mrb[0].mxu0
        %v765 = vadd.f32 %v620, %v764
        %v766 = vpop.f32.mrb[0].mxu0
        %v767 = vpop.f32.mrb[0].mxu0
        %v768 = vadd.f32 %v624, %v767
        %v769 = vpop.f32.mrb[0].mxu0
        %770 = vmatprep.mubr.bf16.mxu0 0
        %771 = vmatmul.mubr.bf16.gmra.mrb[0].mxu0 %v715
        %v772 = vpop.f32.mrb[0].mxu0
        %v773 = vadd.f32 %v628, %v772
        %v774 = vpop.f32.mrb[0].mxu0
        %v775 = vpop.f32.mrb[0].mxu0
        %v776 = vadd.f32 %v632, %v775
        %v777 = vpop.f32.mrb[0].mxu0
        %778 = vmatprep.mubr.bf16.mxu0 0
        %779 = vmatmul.mubr.bf16.gmra.mrb[0].mxu0 %v716
        %v780 = vpop.f32.mrb[0].mxu0
        %v781 = vadd.f32 %v636, %v780
        %v782 = vpop.f32.mrb[0].mxu0
        %v783 = vpop.f32.mrb[0].mxu0
        %v784 = vadd.f32 %v640, %v783
        %v785 = vpop.f32.mrb[0].mxu0
        %786 = vmatprep.mubr.bf16.mxu0 0
        %787 = vmatmul.mubr.bf16.gmra.mrb[0].mxu0 %v717
        %v788 = vpop.f32.mrb[0].mxu0
        %v789 = vadd.f32 %v644, %v788
        %v790 = vpop.f32.mrb[0].mxu0
        %v791 = vpop.f32.mrb[0].mxu0
        %v792 = vadd.f32 %v648, %v791
        %v793 = vpop.f32.mrb[0].mxu0
        %794 = vmatprep.mubr.bf16.mxu0 0
        %795 = vmatmul.mubr.bf16.gmra.mrb[0].mxu0 %v718
        %v796 = vpop.f32.mrb[0].mxu0
        %v797 = vadd.f32 %v652, %v796
        %v798 = vpop.f32.mrb[0].mxu0
        %v799 = vpop.f32.mrb[0].mxu0
        %v800 = vadd.f32 %v656, %v799
        %v801 = vpop.f32.mrb[0].mxu0
        %802 = vmatprep.mubr.bf16.mxu0 0
        %803 = vmatmul.mubr.bf16.gmra.mrb[0].mxu0 %v719
        %v804 = vpop.f32.mrb[0].mxu0
        %v805 = vadd.f32 %v660, %v804
        %v806 = vpop.f32.mrb[0].mxu0
        %v807 = vpop.f32.mrb[0].mxu0
        %v808 = vadd.f32 %v664, %v807
        %v809 = vpop.f32.mrb[0].mxu0
        %810 = vmatprep.mubr.bf16.mxu0 0
        %811 = vmatmul.mubr.bf16.gmra.mrb[0].mxu0 %v720
        %v812 = vpop.f32.mrb[0].mxu0
        %v813 = vadd.f32 %v668, %v812
        %v814 = vpop.f32.mrb[0].mxu0
        %v815 = vpop.f32.mrb[0].mxu0
        %v816 = vadd.f32 %v672, %v815
        %v817 = vpop.f32.mrb[0].mxu0
        %818 = vmatprep.mubr.bf16.mxu0 0
        %819 = vmatmul.mubr.bf16.gmra.mrb[0].mxu0 %v721
        %v820 = vpop.f32.mrb[0].mxu0
        %v821 = vadd.f32 %v676, %v820
        %v822 = vpop.f32.mrb[0].mxu0
        %v823 = vpop.f32.mrb[0].mxu0
        %v824 = vadd.f32 %v680, %v823
        %v825 = vpop.f32.mrb[0].mxu0
        %826 = vdwg.mxu0
        %v827 = vmax.f32 %v765, 0.0
        %v828 = vmax.f32 %v768, 0.0
        %v829 = vmax.f32 %v773, 0.0
        %v830 = vmax.f32 %v776, 0.0
        %v831 = vmax.f32 %v781, 0.0
        %v832 = vmax.f32 %v784, 0.0
        %v833 = vmax.f32 %v789, 0.0
        %v834 = vmax.f32 %v792, 0.0
        %v835 = vmax.f32 %v797, 0.0
        %v836 = vmax.f32 %v800, 0.0
        %v837 = vmax.f32 %v805, 0.0
        %v838 = vmax.f32 %v808, 0.0
        %v839 = vmax.f32 %v813, 0.0
        %v840 = vmax.f32 %v816, 0.0
        %v841 = vmax.f32 %v821, 0.0
        %v842 = vmax.f32 %v824, 0.0
        %v843 = vpack.c.bf16 %v828, %v827
        %v844 = vpack.c.bf16 %v830, %v829
        %v845 = vpack.c.bf16 %v832, %v831
        %v846 = vpack.c.bf16 %v834, %v833
        %v847 = vpack.c.bf16 %v836, %v835
        %v848 = vpack.c.bf16 %v838, %v837
        %v849 = vpack.c.bf16 %v840, %v839
        %v850 = vpack.c.bf16 %v842, %v841
        %v851 = vld [vmem:[%s3] sm:$0xf]
        %v852 = vld [vmem:[%s3 + $0x4] sm:$0xf]
        %v853 = vld [vmem:[%s3 + $0x8] sm:$0xf]
        %v854 = vld [vmem:[%s3 + $0xc] sm:$0xf]
        %v855 = vld [vmem:[%s3 + $0x10] sm:$0xf]
        %v856 = vld [vmem:[%s3 + $0x14] sm:$0xf]
        %v857 = vld [vmem:[%s3 + $0x18] sm:$0xf]
        %v858 = vld [vmem:[%s3 + $0x1c] sm:$0xf]
        %v859 = vld [vmem:[%s3 + $0x20] sm:$0xf]
        %v860 = vld [vmem:[%s3 + $0x24] sm:$0xf]
        %v861 = vld [vmem:[%s3 + $0x28] sm:$0xf]
        %v862 = vld [vmem:[%s3 + $0x2c] sm:$0xf]
        %v863 = vld [vmem:[%s3 + $0x30] sm:$0xf]
        %v864 = vld [vmem:[%s3 + $0x34] sm:$0xf]
        %v865 = vld [vmem:[%s3 + $0x38] sm:$0xf]
        %v866 = vld [vmem:[%s3 + $0x3c] sm:$0xf]
        %867 = vset.pattern.permute.xlu0 2
        %868 = vperm.xlu0 %867, %v298
        %v869 = vpop.permute.xlu0 %868
        %871 = vset.pattern.permute.xlu0 2
        %872 = vperm.xlu0 %871, %v299
        %v873 = vpop.permute.xlu0 %872
        %875 = vset.pattern.permute.xlu0 2
        %876 = vperm.xlu0 %875, %v300
        %v877 = vpop.permute.xlu0 %876
        %879 = vset.pattern.permute.xlu0 2
        %880 = vperm.xlu0 %879, %v301
        %v881 = vpop.permute.xlu0 %880
        %883 = vset.pattern.permute.xlu0 2
        %884 = vperm.xlu0 %883, %v302
        %v885 = vpop.permute.xlu0 %884
        %887 = vset.pattern.permute.xlu0 2
        %888 = vperm.xlu0 %887, %v303
        %v889 = vpop.permute.xlu0 %888
        %891 = vset.pattern.permute.xlu0 2
        %892 = vperm.xlu0 %891, %v304
        %v893 = vpop.permute.xlu0 %892
        %895 = vset.pattern.permute.xlu0 2
        %896 = vperm.xlu0 %895, %v305
        %v897 = vpop.permute.xlu0 %896
        %899 = vset.pattern.permute.xlu0 2
        %900 = vperm.xlu0 %899, %v306
        %v901 = vpop.permute.xlu0 %900
        %903 = vset.pattern.permute.xlu0 2
        %904 = vperm.xlu0 %903, %v307
        %v905 = vpop.permute.xlu0 %904
        %907 = vset.pattern.permute.xlu0 2
        %908 = vperm.xlu0 %907, %v308
        %v909 = vpop.permute.xlu0 %908
        %911 = vset.pattern.permute.xlu0 2
        %912 = vperm.xlu0 %911, %v309
        %v913 = vpop.permute.xlu0 %912
        %915 = vset.pattern.permute.xlu0 2
        %916 = vperm.xlu0 %915, %v310
        %v917 = vpop.permute.xlu0 %916
        %919 = vset.pattern.permute.xlu0 2
        %920 = vperm.xlu0 %919, %v311
        %v921 = vpop.permute.xlu0 %920
        %923 = vset.pattern.permute.xlu0 2
        %924 = vperm.xlu0 %923, %v312
        %v925 = vpop.permute.xlu0 %924
        %927 = vset.pattern.permute.xlu0 2
        %928 = vperm.xlu0 %927, %v313
        %v929 = vpop.permute.xlu0 %928
        %v947 = vunpack.c.l.b16 %v851
        %v948 = vunpack.c.l.b16 %v852
        %v949 = vunpack.c.l.b16 %v853
        %v950 = vunpack.c.l.b16 %v854
        %v951 = vunpack.c.l.b16 %v855
        %v952 = vunpack.c.l.b16 %v856
        %v953 = vunpack.c.l.b16 %v857
        %v954 = vunpack.c.l.b16 %v858
        %v955 = vunpack.c.l.b16 %v859
        %v956 = vunpack.c.l.b16 %v860
        %v957 = vunpack.c.l.b16 %v861
        %v958 = vunpack.c.l.b16 %v862
        %v959 = vunpack.c.l.b16 %v863
        %v960 = vunpack.c.l.b16 %v864
        %v961 = vunpack.c.l.b16 %v865
        %v962 = vunpack.c.l.b16 %v866
        %v963 = vpack.c.b16 %v948, %v947
        %v964 = vpack.c.b16 %v950, %v949
        %v965 = vpack.c.b16 %v952, %v951
        %v966 = vpack.c.b16 %v954, %v953
        %v967 = vpack.c.b16 %v956, %v955
        %v968 = vpack.c.b16 %v958, %v957
        %v969 = vpack.c.b16 %v960, %v959
        %v970 = vpack.c.b16 %v962, %v961
        %979 = vmatprep.subr.bf16.mxu0 0
        %980 = vmatpush1.bf16.msra.mxu0 %v843
        %981 = vmatprep.subr.bf16.mxu0 0
        %982 = vmatpush1.bf16.msra.mxu0 %v844
        %983 = vmatprep.subr.bf16.mxu0 0
        %984 = vmatpush1.bf16.msra.mxu0 %v845
        %985 = vmatprep.subr.bf16.mxu0 0
        %986 = vmatpush1.bf16.msra.mxu0 %v846
        %987 = vmatprep.subr.bf16.mxu0 0
        %988 = vmatpush1.bf16.msra.mxu0 %v847
        %989 = vmatprep.subr.bf16.mxu0 0
        %990 = vmatpush1.bf16.msra.mxu0 %v848
        %991 = vmatprep.subr.bf16.mxu0 0
        %992 = vmatpush1.bf16.msra.mxu0 %v849
        %993 = vmatprep.subr.bf16.mxu0 0
        %994 = vmatpush1.bf16.msra.mxu0 %v850
        %995 = vmatprep.subr.bf16.mxu0 0
        %996 = vmatpush1.bf16.msra.mxu0 0
        %997 = vmatprep.subr.bf16.mxu0 0
        %998 = vmatpush1.bf16.msra.mxu0 0
        %999 = vmatprep.subr.bf16.mxu0 0
        %1000 = vmatpush1.bf16.msra.mxu0 0
        %1001 = vmatprep.subr.bf16.mxu0 0
        %1002 = vmatpush1.bf16.msra.mxu0 0
        %1003 = vmatprep.subr.bf16.mxu0 0
        %1004 = vmatpush1.bf16.msra.mxu0 0
        %1005 = vmatprep.subr.bf16.mxu0 0
        %1006 = vmatpush1.bf16.msra.mxu0 0
        %1007 = vmatprep.subr.bf16.mxu0 0
        %1008 = vmatpush1.bf16.msra.mxu0 0
        %1009 = vmatprep.subr.bf16.mxu0 0
        %1010 = vmatpush1.bf16.msra.mxu0 0
        %1011 = vmatprep.mubr.bf16.mxu0 0
        %1012 = vmatmul.mubr.bf16.gmra.mrb[0].mxu0 %v963
        %v1013 = vpop.f32.mrb[0].mxu0
        %v1014 = vadd.f32 %v869, %v1013
        %v1015 = vpop.f32.mrb[0].mxu0
        %v1016 = vpop.f32.mrb[0].mxu0
        %v1017 = vadd.f32 %v873, %v1016
        %v1018 = vpop.f32.mrb[0].mxu0
        %1019 = vmatprep.mubr.bf16.mxu0 0
        %1020 = vmatmul.mubr.bf16.gmra.mrb[0].mxu0 %v964
        %v1021 = vpop.f32.mrb[0].mxu0
        %v1022 = vadd.f32 %v877, %v1021
        %v1023 = vpop.f32.mrb[0].mxu0
        %v1024 = vpop.f32.mrb[0].mxu0
        %v1025 = vadd.f32 %v881, %v1024
        %v1026 = vpop.f32.mrb[0].mxu0
        %1027 = vmatprep.mubr.bf16.mxu0 0
        %1028 = vmatmul.mubr.bf16.gmra.mrb[0].mxu0 %v965
        %v1029 = vpop.f32.mrb[0].mxu0
        %v1030 = vadd.f32 %v885, %v1029
        %v1031 = vpop.f32.mrb[0].mxu0
        %v1032 = vpop.f32.mrb[0].mxu0
        %v1033 = vadd.f32 %v889, %v1032
        %v1034 = vpop.f32.mrb[0].mxu0
        %1035 = vmatprep.mubr.bf16.mxu0 0
        %1036 = vmatmul.mubr.bf16.gmra.mrb[0].mxu0 %v966
        %v1037 = vpop.f32.mrb[0].mxu0
        %v1038 = vadd.f32 %v893, %v1037
        %v1039 = vpop.f32.mrb[0].mxu0
        %v1040 = vpop.f32.mrb[0].mxu0
        %v1041 = vadd.f32 %v897, %v1040
        %v1042 = vpop.f32.mrb[0].mxu0
        %1043 = vmatprep.mubr.bf16.mxu0 0
        %1044 = vmatmul.mubr.bf16.gmra.mrb[0].mxu0 %v967
        %v1045 = vpop.f32.mrb[0].mxu0
        %v1046 = vadd.f32 %v901, %v1045
        %v1047 = vpop.f32.mrb[0].mxu0
        %v1048 = vpop.f32.mrb[0].mxu0
        %v1049 = vadd.f32 %v905, %v1048
        %v1050 = vpop.f32.mrb[0].mxu0
        %1051 = vmatprep.mubr.bf16.mxu0 0
        %1052 = vmatmul.mubr.bf16.gmra.mrb[0].mxu0 %v968
        %v1053 = vpop.f32.mrb[0].mxu0
        %v1054 = vadd.f32 %v909, %v1053
        %v1055 = vpop.f32.mrb[0].mxu0
        %v1056 = vpop.f32.mrb[0].mxu0
        %v1057 = vadd.f32 %v913, %v1056
        %v1058 = vpop.f32.mrb[0].mxu0
        %1059 = vmatprep.mubr.bf16.mxu0 0
        %1060 = vmatmul.mubr.bf16.gmra.mrb[0].mxu0 %v969
        %v1061 = vpop.f32.mrb[0].mxu0
        %v1062 = vadd.f32 %v917, %v1061
        %v1063 = vpop.f32.mrb[0].mxu0
        %v1064 = vpop.f32.mrb[0].mxu0
        %v1065 = vadd.f32 %v921, %v1064
        %v1066 = vpop.f32.mrb[0].mxu0
        %1067 = vmatprep.mubr.bf16.mxu0 0
        %1068 = vmatmul.mubr.bf16.gmra.mrb[0].mxu0 %v970
        %v1069 = vpop.f32.mrb[0].mxu0
        %v1070 = vadd.f32 %v925, %v1069
        %v1071 = vpop.f32.mrb[0].mxu0
        %v1072 = vpop.f32.mrb[0].mxu0
        %v1073 = vadd.f32 %v929, %v1072
        %v1074 = vpop.f32.mrb[0].mxu0
        %1075 = vdwg.mxu0
        %v1076 = vmax.f32 %v1014, 0.0
        %v1077 = vmax.f32 %v1017, 0.0
        %v1078 = vmax.f32 %v1022, 0.0
        %v1079 = vmax.f32 %v1025, 0.0
        %v1080 = vmax.f32 %v1030, 0.0
        %v1081 = vmax.f32 %v1033, 0.0
        %v1082 = vmax.f32 %v1038, 0.0
        %v1083 = vmax.f32 %v1041, 0.0
        %v1084 = vmax.f32 %v1046, 0.0
        %v1085 = vmax.f32 %v1049, 0.0
        %v1086 = vmax.f32 %v1054, 0.0
        %v1087 = vmax.f32 %v1057, 0.0
        %v1088 = vmax.f32 %v1062, 0.0
        %v1089 = vmax.f32 %v1065, 0.0
        %v1090 = vmax.f32 %v1070, 0.0
        %v1091 = vmax.f32 %v1073, 0.0
        %v1092 = vpack.c.bf16 %v1077, %v1076
        %v1093 = vpack.c.bf16 %v1079, %v1078
        %v1094 = vpack.c.bf16 %v1081, %v1080
        %v1095 = vpack.c.bf16 %v1083, %v1082
        %v1096 = vpack.c.bf16 %v1085, %v1084
        %v1097 = vpack.c.bf16 %v1087, %v1086
        %v1098 = vpack.c.bf16 %v1089, %v1088
        %v1099 = vpack.c.bf16 %v1091, %v1090
        %v1100 = vld [vmem:[%s4] sm:$0xf]
        %1101 = vset.pattern.permute.xlu0 3
        %1102 = vperm.xlu0 %1101, %v298
        %v1103 = vpop.permute.xlu0 %1102
        %1105 = vmatprep.subr.bf16.mxu0 0
        %1106 = vmatpush1.bf16.msra.mxu0 %v1092
        %1107 = vmatprep.subr.bf16.mxu0 0
        %1108 = vmatpush1.bf16.msra.mxu0 %v1093
        %1109 = vmatprep.subr.bf16.mxu0 0
        %1110 = vmatpush1.bf16.msra.mxu0 %v1094
        %1111 = vmatprep.subr.bf16.mxu0 0
        %1112 = vmatpush1.bf16.msra.mxu0 %v1095
        %1113 = vmatprep.subr.bf16.mxu0 0
        %1114 = vmatpush1.bf16.msra.mxu0 %v1096
        %1115 = vmatprep.subr.bf16.mxu0 0
        %1116 = vmatpush1.bf16.msra.mxu0 %v1097
        %1117 = vmatprep.subr.bf16.mxu0 0
        %1118 = vmatpush1.bf16.msra.mxu0 %v1098
        %1119 = vmatprep.subr.bf16.mxu0 0
        %1120 = vmatpush1.bf16.msra.mxu0 %v1099
        %1121 = vmatprep.subr.bf16.mxu0 0
        %1122 = vmatpush1.bf16.msra.mxu0 0
        %1123 = vmatprep.subr.bf16.mxu0 0
        %1124 = vmatpush1.bf16.msra.mxu0 0
        %1125 = vmatprep.subr.bf16.mxu0 0
        %1126 = vmatpush1.bf16.msra.mxu0 0
        %1127 = vmatprep.subr.bf16.mxu0 0
        %1128 = vmatpush1.bf16.msra.mxu0 0
        %1129 = vmatprep.subr.bf16.mxu0 0
        %1130 = vmatpush1.bf16.msra.mxu0 0
        %1131 = vmatprep.subr.bf16.mxu0 0
        %1132 = vmatpush1.bf16.msra.mxu0 0
        %1133 = vmatprep.subr.bf16.mxu0 0
        %1134 = vmatpush1.bf16.msra.mxu0 0
        %1135 = vmatprep.subr.bf16.mxu0 0
        %1136 = vmatpush1.bf16.msra.mxu0 0
        %1137 = vmatprep.mubr.bf16.mxu0 0
        %1138 = vmatmul.mubr.bf16.gmra.mrb[0].mxu0 %v1100
        %v1139 = vpop.f32.mrb[0].mxu0
        %v1140 = vadd.f32 %v1103, %v1139
        %v1141 = vpop.f32.mrb[0].mxu0
        %v1142 = vpop.f32.mrb[0].mxu0
        %v1143 = vpop.f32.mrb[0].mxu0
        %1144 = vdwg.mxu0
        %v1145 = vmax.f32 %v1140, 0.0
        %v1146 = vmin.f32 %v1145, 1.0
        %1147 = vst [vmem:[%s294] sm:$0xff] %v1146
        %s1148 = sand.u32 %s159, 1
        %s1149 = scalar_lea.sflag [#allocation4], %s1148
        %s1150 = sand.u32 %s159, 1
        %s1151 = smul.addr %s1150, 8
        %s1152 = scalar_lea.vmem [#allocation3], %s1151
        // Predicated region
        $region86: #{tpu_custom_call.1} parent=80 // pred_check
          %p1153 = pneg %p169
        $region87: #{tpu_custom_call.1} parent=80 // pred_check_branch
          %1155 = sbr.rel (%p1153) target = $region89
        $region88: #{tpu_custom_call.1} parent=80 // pred_region
          %s1157 = ssub.s32 128, 128
          %1158 = vsyncadd %s1149, %s1157
          %s1159 = smul.addr %s20, 128
          %s1160 = scalar_lea.hbm %s6, %s1159
          %s1162 = sshll.u32 %s1152, 4
          %s1163 = int_to_ptr.vmem [resolvable:$true] %s1162
          %1165 = dma.vmem_to_hbm [thread:$0]  %s1163, 128, %s1160, %s1149
        $region89: #{tpu_custom_call.1} parent=80 // pred_fallthru
          _
      $region81: #{tpu_custom_call.1} parent=5 // pred_fallthru
        _
      %p1166 = scmp.le.s32.totalorder 2, %s15
      // Predicated region
      $region90: #{tpu_custom_call.1} parent=5 // pred_check
        %p1167 = pneg %p1166
      $region91: #{tpu_custom_call.1} parent=5 // pred_check_branch
        %1169 = sbr.rel (%p1167) target = $region93
      $region92: #{tpu_custom_call.1} parent=5 // pred_region
        %s1170 = ssub.s32 %s15, 2
        // Predicated region
        $region94: #{tpu_custom_call.1} parent=92 // pred_check
          %p1171 = pneg %p175
        $region95: #{tpu_custom_call.1} parent=92 // pred_check_branch
          %1173 = sbr.rel (%p1171) target = $region97
        $region96: #{tpu_custom_call.1} parent=92 // pred_region
          %s1174 = sand.u32 %s160, 1
          %s1175 = scalar_lea.sflag [#allocation4], %s1174
          %s1176 = sand.u32 %s160, 1
          %s1177 = smul.addr %s1176, 8
          %s1178 = scalar_lea.vmem [#allocation3], %s1177
          %1179 = dma.done %s1175, 128
        $region97: #{tpu_custom_call.1} parent=92 // pred_fallthru
          _
      $region93: #{tpu_custom_call.1} parent=5 // pred_fallthru
        _
    $region6: #{tpu_custom_call.1} parent=1 // loop_footer
      %s19 = sadd.s32 1, %s15
    $region7: #{tpu_custom_call.1} parent=1 // loop_footer_branch
      %14 = sbr.rel target = $region3
    $region8: #{tpu_custom_call.1} parent=1 // loop_exit
      _
    %1180 = vsyncpa [#allocation4], 1
    %s1181 = scalar_lea.sflag [#allocation4], 1
    %1182 = vsyncpa %s1181, 1

</llo_original>
